<compile_context>
chip_gen: v5e
topology: v5e:2x2
jax: 0.10.0
libtpu: 0.0.40
codegen_flags: <defaults>
</compile_context>

<pallas_src>
import functools

import jax
import jax.numpy as jnp
from jax.experimental import pallas as pl
from jax.experimental.pallas import tpu as pltpu


def _mlp_kernel(x_ref, w_ref, b_ref, o_ref):
    # x_ref/o_ref: (BB, D, TL)   w_ref: (D, D)   b_ref: (D, 1)
    w = w_ref[...]
    b = b_ref[...]
    # BB is a static block size (1 on the tiled path, B on the small-problem path);
    # the Python loop unrolls at trace time.
    for bb in range(x_ref.shape[0]):
        x = x_ref[bb]                                   # (D, TL): channels x positions
        # 1x1 conv == W @ x on the MXU.  Default precision passed 1e-4 parity vs a
        # Precision.HIGHEST reference at D=32; kernel is HBM-bound so MXU shape is irrelevant.
        h = jnp.dot(w, x, preferred_element_type=jnp.float32)
        h = jnp.maximum(h + b, 0.0)                     # bias broadcast over lanes + ReLU
        # TODO(synk): nn.Dropout(p=0.15) is identity in eval mode; training-mode RNG masking
        # (pltpu.prng_seed / prng_random_bits) is not implemented here.
        o_ref[bb] = (h + x.astype(jnp.float32)).astype(o_ref.dtype)


def _pick_lane_tile(L, D, itemsize):
    """Largest 128-multiple lane tile whose double-buffered (in+out) footprint is ~16 MiB."""
    budget = 16 * 1024 * 1024                           # 2x in + 2x out blocks
    tl = (budget // (4 * D * itemsize)) // 128 * 128
    tl = int(max(128, tl))
    if L <= tl:
        return int(L)                                   # single lane tile == full array dim
    return tl


@functools.partial(jax.jit, static_argnames=("tl",))
def mlp_pallas(x, w, b, *, tl=None):
    """STID MLP forward: relu(conv1x1(x)) + x, computed in native NCHW layout.

    x: [B, D, N, W] (or [B, D, L]) float32;  w: [D, D];  b: [D].
    Requires hidden_dim == input_dim (residual add), as in STID.
    """
    orig_shape = x.shape
    B, D = x.shape[0], x.shape[1]
    # Residual add silently requires hidden_dim == input_dim -- make it explicit.
    assert w.shape == (D, D), f"fc1 weight must be (D, D)=({D},{D}), got {w.shape}"
    assert b.shape == (D,), f"fc1 bias must be (D,)=({D},), got {b.shape}"

    L = 1
    for s in x.shape[2:]:
        L *= s
    x3 = x.reshape(B, D, L)                             # pure reshape: no HBM relayout
    b2 = b.reshape(D, 1)

    itemsize = jnp.dtype(x.dtype).itemsize
    total_bytes = B * D * L * itemsize
    small = total_bytes <= (1 << 20)                    # whole problem fits in one VMEM block

    if small:
        bb_block = B
        tile = L
        ntiles = 1
        grid = (1,)
        x_map = lambda i: (0, 0, 0)
    else:
        bb_block = 1
        tile = int(tl) if tl is not None else _pick_lane_tile(L, D, itemsize)
        ntiles = pl.cdiv(L, tile)
        grid = (B * ntiles,)                            # flattened -> even megacore sharding
        x_map = lambda i, nt=ntiles: (i // nt, 0, i % nt)

    # VMEM budget: double-buffered in+out blocks + resident weight/bias + headroom.
    block_bytes = bb_block * D * tile * itemsize
    vmem_limit = int(min(32 * 1024 * 1024,
                         max(4 * 1024 * 1024,
                             4 * block_bytes + 2 * (D * D + D) * itemsize
                             + 2 * 1024 * 1024)))

    # Cost on the true L (no padding anywhere).
    cost = pl.CostEstimate(
        flops=2 * B * L * D * D,
        transcendentals=0,
        bytes_accessed=2 * B * L * D * itemsize + D * D * itemsize + D * itemsize,
    )

    out3 = pl.pallas_call(
        _mlp_kernel,
        out_shape=jax.ShapeDtypeStruct((B, D, L), x.dtype),
        grid=grid,
        in_specs=[
            pl.BlockSpec((bb_block, D, tile), x_map),        # x tile (channels x positions)
            pl.BlockSpec((D, D), lambda i: (0, 0)),          # weight, VMEM-resident
            pl.BlockSpec((D, 1), lambda i: (0, 0)),          # bias, VMEM-resident
        ],
        out_specs=pl.BlockSpec((bb_block, D, tile), x_map),
        compiler_params=pltpu.CompilerParams(
            dimension_semantics=("parallel",),
            vmem_limit_bytes=vmem_limit,
        ),
        cost_estimate=cost,
    )(x3, w, b2)

    return out3.reshape(orig_shape)


def reference_mlp(x, w, b):
    # Pure-JAX reference of the PyTorch forward (eval mode), in NCHW.
    orig_shape = x.shape
    B, D = x.shape[0], x.shape[1]
    x3 = x.reshape(B, D, -1)
    h = jnp.einsum("oi,bil->bol", w, x3, precision=jax.lax.Precision.HIGHEST)
    h = jnp.maximum(h + b[None, :, None], 0.0) + x3
    return h.reshape(orig_shape)


if __name__ == "__main__":
    key = jax.random.PRNGKey(0)
    kx, kw, kb, kw2, kb2, kx2, kx3 = jax.random.split(key, 7)

    # STID uses NCHW [B, D, N, 1] with hidden_dim == input_dim (residual requires it).
    B, D, N, Wsp = 2, 32, 16, 1
    x = jax.random.normal(kx, (B, D, N, Wsp), dtype=jnp.float32)

    # fc1: Conv2d(D, D, kernel_size=(1,1), bias=True) -> weight [D, D], bias [D]
    w1 = jax.random.normal(kw, (D, D), dtype=jnp.float32) * 0.1
    b1 = jax.random.normal(kb, (D,), dtype=jnp.float32) * 0.1
    # fc2 parameters exist in __init__ but are unused in forward(); created for fidelity.
    w2 = jax.random.normal(kw2, (D, D), dtype=jnp.float32) * 0.1
    b2 = jax.random.normal(kb2, (D,), dtype=jnp.float32) * 0.1
    del w2, b2

    # 1) Tiny STID shape -> small-problem fast path: one grid step, block (B, D, L).
    out = jax.block_until_ready(mlp_pallas(x, w1, b1))
    ref = reference_mlp(x, w1, b1)
    assert out.shape == (B, D, N, Wsp)
    assert jnp.allclose(out, ref, atol=1e-4, rtol=1e-4), "mismatch vs reference (small)"

    # 2) Medium, non-128-aligned position count -> tiled path with tl == L (full-dim lane
    #    block, no padding, no trailing slice).
    x_med = jax.random.normal(kx2, (2, D, 4100, 1), dtype=jnp.float32)
    out_med = jax.block_until_ready(mlp_pallas(x_med, w1, b1))
    ref_med = reference_mlp(x_med, w1, b1)
    assert out_med.shape == x_med.shape
    assert jnp.allclose(out_med, ref_med, atol=1e-4, rtol=1e-4), "mismatch vs reference (med)"

    # 3) Large L -> multi-tile flattened grid (B * ntiles) with a partial, masked edge block.
    x_big = jax.random.normal(kx3, (2, D, 70000, 1), dtype=jnp.float32)
    out_big = jax.block_until_ready(mlp_pallas(x_big, w1, b1))
    ref_big = reference_mlp(x_big, w1, b1)
    assert out_big.shape == x_big.shape
    assert jnp.allclose(out_big, ref_big, atol=1e-4, rtol=1e-4), "mismatch vs reference (big)"

    print("KERNEL_OK")
</pallas_src>

<mosaic_0001>
module attributes {stable_mosaic.version = 11 : i64} {
  func.func @_mlp_kernel(%arg0: i32, %arg1: memref<2x32x16xf32, #tpu.memory_space<vmem>>, %arg2: memref<32x32xf32, #tpu.memory_space<vmem>>, %arg3: memref<32x1xf32, #tpu.memory_space<vmem>>, %arg4: memref<2x32x16xf32, #tpu.memory_space<vmem>>) attributes {dimension_semantics = [#tpu.dimension_semantics<parallel>], iteration_bounds = array<i64: 1>, scalar_prefetch = 0 : i64, scratch_operands = 0 : i64, tpu.core_type = #tpu.core_type<tc>, window_params = [{pipeline_mode = #tpu.pipeline_mode<synchronous>, transform_indices = @transform_0, window_bounds = array<i64: 2, 32, 16>}, {pipeline_mode = #tpu.pipeline_mode<synchronous>, transform_indices = @transform_1, window_bounds = array<i64: 32, 32>}, {pipeline_mode = #tpu.pipeline_mode<synchronous>, transform_indices = @transform_2, window_bounds = array<i64: 32, 1>}, {pipeline_mode = #tpu.pipeline_mode<synchronous>, transform_indices = @transform_3, window_bounds = array<i64: 2, 32, 16>}]} {
    %c0 = arith.constant 0 : index
    %c0_0 = arith.constant 0 : index
    %0 = vector.load %arg2[%c0, %c0_0] : memref<32x32xf32, #tpu.memory_space<vmem>>, vector<32x32xf32>
    %c0_1 = arith.constant 0 : index
    %c0_2 = arith.constant 0 : index
    %1 = vector.load %arg3[%c0_1, %c0_2] : memref<32x1xf32, #tpu.memory_space<vmem>>, vector<32x1xf32>
    %c0_3 = arith.constant 0 : index
    %c0_4 = arith.constant 0 : index
    %c0_5 = arith.constant 0 : index
    %2 = vector.load %arg1[%c0_3, %c0_4, %c0_5] : memref<2x32x16xf32, #tpu.memory_space<vmem>>, vector<1x32x16xf32>
    %3 = vector.shape_cast %2 : vector<1x32x16xf32> to vector<32x16xf32>
    %cst = arith.constant dense<0.000000e+00> : vector<32x16xf32>
    %4 = tpu.matmul %0, %3, %cst {dimension_numbers = #tpu.dot_dimension_numbers<[1], [0], [0], [1], [0, 0, 1, 1], [], []>} : vector<32x32xf32>, vector<32x16xf32>, vector<32x16xf32> -> vector<32x16xf32>
    %5 = vector.broadcast %1 : vector<32x1xf32> to vector<32x16xf32>
    %6 = arith.addf %4, %5 : vector<32x16xf32>
    %cst_6 = arith.constant 0.000000e+00 : f32
    %7 = vector.broadcast %cst_6 : f32 to vector<32x16xf32>
    %8 = arith.maximumf %6, %7 : vector<32x16xf32>
    %9 = arith.addf %8, %3 : vector<32x16xf32>
    %c0_7 = arith.constant 0 : index
    %c0_8 = arith.constant 0 : index
    %c0_9 = arith.constant 0 : index
    %10 = vector.load %arg4[%c0_7, %c0_8, %c0_9] : memref<2x32x16xf32, #tpu.memory_space<vmem>>, vector<1x32x16xf32>
    %11 = vector.shape_cast %10 : vector<1x32x16xf32> to vector<32x16xf32>
    %12 = vector.shape_cast %9 : vector<32x16xf32> to vector<1x32x16xf32>
    tpu.vector_store %arg4[%c0_7, %c0_8, %c0_9], %12 {strides = array<i32>} : memref<2x32x16xf32, #tpu.memory_space<vmem>>, vector<1x32x16xf32>,
    %c1 = arith.constant 1 : index
    %c0_10 = arith.constant 0 : index
    %c0_11 = arith.constant 0 : index
    %13 = vector.load %arg1[%c1, %c0_10, %c0_11] : memref<2x32x16xf32, #tpu.memory_space<vmem>>, vector<1x32x16xf32>
    %14 = vector.shape_cast %13 : vector<1x32x16xf32> to vector<32x16xf32>
    %cst_12 = arith.constant dense<0.000000e+00> : vector<32x16xf32>
    %15 = tpu.matmul %0, %14, %cst_12 {dimension_numbers = #tpu.dot_dimension_numbers<[1], [0], [0], [1], [0, 0, 1, 1], [], []>} : vector<32x32xf32>, vector<32x16xf32>, vector<32x16xf32> -> vector<32x16xf32>
    %16 = vector.broadcast %1 : vector<32x1xf32> to vector<32x16xf32>
    %17 = arith.addf %15, %16 : vector<32x16xf32>
    %cst_13 = arith.constant 0.000000e+00 : f32
    %18 = vector.broadcast %cst_13 : f32 to vector<32x16xf32>
    %19 = arith.maximumf %17, %18 : vector<32x16xf32>
    %20 = arith.addf %19, %14 : vector<32x16xf32>
    %c1_14 = arith.constant 1 : index
    %c0_15 = arith.constant 0 : index
    %c0_16 = arith.constant 0 : index
    %21 = vector.load %arg4[%c1_14, %c0_15, %c0_16] : memref<2x32x16xf32, #tpu.memory_space<vmem>>, vector<1x32x16xf32>
    %22 = vector.shape_cast %21 : vector<1x32x16xf32> to vector<32x16xf32>
    %23 = vector.shape_cast %20 : vector<32x16xf32> to vector<1x32x16xf32>
    tpu.vector_store %arg4[%c1_14, %c0_15, %c0_16], %23 {strides = array<i32>} : memref<2x32x16xf32, #tpu.memory_space<vmem>>, vector<1x32x16xf32>,
    return
  }
  func.func @transform_0(%arg0: i32) -> (i32, i32, i32) {
    %c0_i32 = arith.constant 0 : i32
    %c0_i32_0 = arith.constant 0 : i32
    %c0_i32_1 = arith.constant 0 : i32
    %c0_i32_2 = arith.constant 0 : i32
    return %c0_i32, %c0_i32_0, %c0_i32_1 : i32, i32, i32
  }
  func.func @transform_1(%arg0: i32) -> (i32, i32) {
    %c0_i32 = arith.constant 0 : i32
    %c0_i32_0 = arith.constant 0 : i32
    %c0_i32_1 = arith.constant 0 : i32
    return %c0_i32, %c0_i32_0 : i32, i32
  }
  func.func @transform_2(%arg0: i32) -> (i32, i32) {
    %c0_i32 = arith.constant 0 : i32
    %c0_i32_0 = arith.constant 0 : i32
    %c0_i32_1 = arith.constant 0 : i32
    return %c0_i32, %c0_i32_0 : i32, i32
  }
  func.func @transform_3(%arg0: i32) -> (i32, i32, i32) {
    %c0_i32 = arith.constant 0 : i32
    %c0_i32_0 = arith.constant 0 : i32
    %c0_i32_1 = arith.constant 0 : i32
    %c0_i32_2 = arith.constant 0 : i32
    return %c0_i32, %c0_i32_0, %c0_i32_1 : i32, i32, i32
  }
}

</mosaic_0001>

<llo_original>
// kernel: mlp_pallas.1
$region0: #{mlp_pallas.1}
  #allocation0 [shape = 'u32[]', space=smem, size = 0x4, offset = 0x4, fixed_abs, tag = 'smem constant byte address 0x4 - core index']
  #allocation1 [shape = 'u32[72,128]{1,0:T(1,128)}', space=vmem, size = 0x9000, scoped, tag = 'internal scratch']
  %s0 = inlined_call_operand.vmem [shape: f32[2,32,16], index: 0, kind: input, shape index: {}]
  %s1 = inlined_call_operand.vmem [shape: f32[32,32], index: 1, kind: input, shape index: {}]
  %s2 = inlined_call_operand.vmem [shape: f32[32,1], index: 2, kind: input, shape index: {}]
  %s3 = inlined_call_operand.vmem [shape: f32[2,32,16], index: 3, kind: output, shape index: {}]
  %s4 = sld [smem:[#allocation0]]
  $region22: #{mlp_pallas.1} parent=0
    _
  %s6 = ssub.s32 1, %s4
  %s7 = scalar_select 0, %s6, %s4
  // Predicated region
  $region2: #{mlp_pallas.1} parent=0 // pred_check
    _
  $region3: #{mlp_pallas.1} parent=0 // pred_check_branch
    %9 = sbr.rel (0) target = $region5
  $region4: #{mlp_pallas.1} parent=0 // pred_region
    _
  $region5: #{mlp_pallas.1} parent=0 // pred_fallthru
    _
  // Predicated region
  $region6: #{mlp_pallas.1} parent=0 // pred_check
    _
  $region7: #{mlp_pallas.1} parent=0 // pred_check_branch
    %11 = sbr.rel (0) target = $region9
  $region8: #{mlp_pallas.1} parent=0 // pred_region
    _
  $region9: #{mlp_pallas.1} parent=0 // pred_fallthru
    _
  // Predicated region
  $region10: #{mlp_pallas.1} parent=0 // pred_check
    _
  $region11: #{mlp_pallas.1} parent=0 // pred_check_branch
    %13 = sbr.rel (0) target = $region13
  $region12: #{mlp_pallas.1} parent=0 // pred_region
    _
  $region13: #{mlp_pallas.1} parent=0 // pred_fallthru
    _
  %v14 = vld [vmem:[%s1] sm:$0xff]
  %v15 = vld [vmem:[%s1 + $0x8] sm:$0xff]
  %v16 = vld [vmem:[%s1 + $0x10] sm:$0xff]
  %v17 = vld [vmem:[%s1 + $0x18] sm:$0xff]
  %v18 = vld [vmem:[%s2] sm:$0xff]
  %v19 = vld [vmem:[%s2 + $0x8] sm:$0xff]
  %v20 = vld [vmem:[%s2 + $0x10] sm:$0xff]
  %v21 = vld [vmem:[%s2 + $0x18] sm:$0xff]
  %v22 = vld [vmem:[%s0] sm:$0xff]
  %v23 = vld [vmem:[%s0 + $0x8] sm:$0xff]
  %v24 = vld [vmem:[%s0 + $0x10] sm:$0xff]
  %v25 = vld [vmem:[%s0 + $0x18] sm:$0xff]
  %27 = vset.pattern.permute.xlu0 0
  %28 = vperm.xlu0 %27, %v18
  %v29 = vpop.permute.xlu0 %28
  %32 = vset.pattern.permute.xlu0 0
  %33 = vperm.xlu0 %32, %v19
  %v34 = vpop.permute.xlu0 %33
  %37 = vset.pattern.permute.xlu0 0
  %38 = vperm.xlu0 %37, %v20
  %v39 = vpop.permute.xlu0 %38
  %42 = vset.pattern.permute.xlu0 0
  %43 = vperm.xlu0 %42, %v21
  %v44 = vpop.permute.xlu0 %43
  %vm46 = vcmask 261120
  %v48 = vsel %vm46, %v14, 0
  %v51 = vsel %vm46, %v15, 0
  %v54 = vsel %vm46, %v16, 0
  %v57 = vsel %vm46, %v17, 0
  %59 = vmatpush.msra.mxu0 0.0
  %60 = vmatpush.msra.mxu0 0.0
  %61 = vmatpush.msra.mxu0 0.0
  %62 = vmatpush.msra.mxu0 0.0
  %63 = vmatpush.msra.mxu0 0.0
  %64 = vmatpush.msra.mxu0 0.0
  %65 = vmatpush.msra.mxu0 0.0
  %66 = vmatpush.msra.mxu0 0.0
  %67 = vmatpush.msra.mxu0 0.0
  %68 = vmatpush.msra.mxu0 0.0
  %69 = vmatpush.msra.mxu0 0.0
  %70 = vmatpush.msra.mxu0 0.0
  %71 = vmatpush.msra.mxu0 %v25
  %72 = vmatpush.msra.mxu0 %v24
  %73 = vmatpush.msra.mxu0 %v23
  %74 = vmatpush.msra.mxu0 %v22
  %75 = vmatmul.f32.gmra.mxu0 %v48
  %v76 = vpop.f32.mrf.mxu0
  %v77 = vadd.f32 %v29, %v76
  %78 = vmatmul.f32.gmra.mxu0 %v51
  %v79 = vpop.f32.mrf.mxu0
  %v80 = vadd.f32 %v34, %v79
  %81 = vmatmul.f32.gmra.mxu0 %v54
  %v82 = vpop.f32.mrf.mxu0
  %v83 = vadd.f32 %v39, %v82
  %84 = vmatmul.f32.gmra.mxu0 %v57
  %v85 = vpop.f32.mrf.mxu0
  %v86 = vadd.f32 %v44, %v85
  %87 = vdwg.mxu0
  %v88 = vmax.f32 %v77, 0.0
  %v89 = vmax.f32 %v80, 0.0
  %v90 = vmax.f32 %v83, 0.0
  %v91 = vmax.f32 %v86, 0.0
  %v92 = vadd.f32 %v88, %v22
  %v93 = vadd.f32 %v89, %v23
  %v94 = vadd.f32 %v90, %v24
  %v95 = vadd.f32 %v91, %v25
  %vm96 = vcmask 130048
  %97 = vst.msk [vmem:[%s3] sm:$0xff] %vm96, %v92
  %98 = vst.msk [vmem:[%s3 + $0x8] sm:$0xff] %vm96, %v93
  %99 = vst.msk [vmem:[%s3 + $0x10] sm:$0xff] %vm96, %v94
  %100 = vst.msk [vmem:[%s3 + $0x18] sm:$0xff] %vm96, %v95
  %s101 = scalar_lea.vmem %s0, 32
  %v102 = vld [vmem:[%s101] sm:$0xff]
  %v103 = vld [vmem:[%s101 + $0x8] sm:$0xff]
  %v104 = vld [vmem:[%s101 + $0x10] sm:$0xff]
  %v105 = vld [vmem:[%s101 + $0x18] sm:$0xff]
  %106 = vmatpush.msra.mxu0 0.0
  %107 = vmatpush.msra.mxu0 0.0
  %108 = vmatpush.msra.mxu0 0.0
  %109 = vmatpush.msra.mxu0 0.0
  %110 = vmatpush.msra.mxu0 0.0
  %111 = vmatpush.msra.mxu0 0.0
  %112 = vmatpush.msra.mxu0 0.0
  %113 = vmatpush.msra.mxu0 0.0
  %114 = vmatpush.msra.mxu0 0.0
  %115 = vmatpush.msra.mxu0 0.0
  %116 = vmatpush.msra.mxu0 0.0
  %117 = vmatpush.msra.mxu0 0.0
  %118 = vmatpush.msra.mxu0 %v105
  %119 = vmatpush.msra.mxu0 %v104
  %120 = vmatpush.msra.mxu0 %v103
  %121 = vmatpush.msra.mxu0 %v102
  %122 = vmatmul.f32.gmra.mxu0 %v48
  %v123 = vpop.f32.mrf.mxu0
  %v124 = vadd.f32 %v29, %v123
  %125 = vmatmul.f32.gmra.mxu0 %v51
  %v126 = vpop.f32.mrf.mxu0
  %v127 = vadd.f32 %v34, %v126
  %128 = vmatmul.f32.gmra.mxu0 %v54
  %v129 = vpop.f32.mrf.mxu0
  %v130 = vadd.f32 %v39, %v129
  %131 = vmatmul.f32.gmra.mxu0 %v57
  %v132 = vpop.f32.mrf.mxu0
  %v133 = vadd.f32 %v44, %v132
  %134 = vdwg.mxu0
  %v135 = vmax.f32 %v124, 0.0
  %v136 = vmax.f32 %v127, 0.0
  %v137 = vmax.f32 %v130, 0.0
  %v138 = vmax.f32 %v133, 0.0
  %v139 = vadd.f32 %v135, %v102
  %v140 = vadd.f32 %v136, %v103
  %v141 = vadd.f32 %v137, %v104
  %v142 = vadd.f32 %v138, %v105
  %s143 = scalar_lea.vmem %s3, 32
  %144 = vst.msk [vmem:[%s143] sm:$0xff] %vm96, %v139
  %145 = vst.msk [vmem:[%s143 + $0x8] sm:$0xff] %vm96, %v140
  %146 = vst.msk [vmem:[%s143 + $0x10] sm:$0xff] %vm96, %v141
  %147 = vst.msk [vmem:[%s143 + $0x18] sm:$0xff] %vm96, %v142
  // Predicated region
  $region14: #{mlp_pallas.1} parent=0 // pred_check
    _
  $region15: #{mlp_pallas.1} parent=0 // pred_check_branch
    %149 = sbr.rel (0) target = $region17
  $region16: #{mlp_pallas.1} parent=0 // pred_region
    _
  $region17: #{mlp_pallas.1} parent=0 // pred_fallthru
    _
  // Predicated region
  $region18: #{mlp_pallas.1} parent=0 // pred_check
    _
  $region19: #{mlp_pallas.1} parent=0 // pred_check_branch
    %151 = sbr.rel (0) target = $region21
  $region20: #{mlp_pallas.1} parent=0 // pred_region
    _
  $region21: #{mlp_pallas.1} parent=0 // pred_fallthru
    _

</llo_original>
